<compile_context>
chip_gen: v7x
topology: tpu7x:2x2x1
jax: 0.10.0
libtpu: 0.0.40
codegen_flags: <defaults>
</compile_context>

<pallas_src>
import jax
import jax.numpy as jnp
from jax.experimental import pallas as pl
from jax.experimental.pallas import tpu as pltpu


def _einsum_gather_kernel(ind_ref, x_ref, w_ref, o_ref):
    # ind_ref: (1, B, K) int32  -- indices for this expert, all batches
    # x_ref:   (B, T, I)        -- full X, VMEM-resident across grid steps
    # w_ref:   (1, I, J)        -- W[e]
    # o_ref:   (B, 1, K, J)     -- output slice for expert e
    B, T, I = x_ref.shape
    K = ind_ref.shape[-1]
    J = w_ref.shape[-1]

    idx = ind_ref[0]                                              # (B, K) int32

    # One-hot gather on the MXU (exact 0/1 selection; OOB index -> zero row).
    t_iota = jax.lax.broadcasted_iota(jnp.int32, (B, K, T), 2)
    onehot = (t_iota == idx[:, :, None]).astype(x_ref.dtype)      # (B, K, T)
    xg = jnp.einsum('bkt,bti->bki', onehot, x_ref[...],
                    preferred_element_type=x_ref.dtype)           # (B, K, I)

    # Single tall matmul for all batches: (B*K, I) @ (I, J), f32 accumulate.
    y = jnp.dot(xg.reshape(B * K, I), w_ref[0],
                preferred_element_type=jnp.float32)               # (B*K, J)

    o_ref[...] = y.reshape(B, 1, K, J).astype(o_ref.dtype)


def einsum_gather(X, W, ind, *, dot_dtype=None):
    """out[b,e,k,j] = sum_i X[b, ind[b,e,k], i] * W[e,i,j]  (f32 output)."""
    B, T, I = X.shape
    E, I2, J = W.shape
    assert I == I2
    K = ind.shape[-1]
    assert ind.shape == (B, E, K)

    if dot_dtype is not None:
        # bf16 (or fp8 on v7x, accuracy permitting) operands; accumulation
        # stays f32 via preferred_element_type inside the kernel.
        X = X.astype(dot_dtype)
        W = W.astype(dot_dtype)

    # (E, B, K): per-expert index block whose last two dims are full array dims.
    ind_e = jnp.transpose(ind.astype(jnp.int32), (1, 0, 2))

    flops = 2 * B * E * K * I * J + 2 * B * E * K * T * I   # main + gather matmuls
    bytes_accessed = (X.size * X.dtype.itemsize
                      + W.size * W.dtype.itemsize
                      + ind_e.size * 4
                      + B * E * K * J * 4)

    grid_spec = pltpu.PrefetchScalarGridSpec(
        num_scalar_prefetch=0,
        grid=(E,),
        in_specs=[
            pl.BlockSpec((1, B, K), lambda e: (e, 0, 0)),   # ind for expert e
            pl.BlockSpec((B, T, I), lambda e: (0, 0, 0)),   # full X, DMA'd once
            pl.BlockSpec((1, I, J), lambda e: (e, 0, 0)),   # W[e], DMA'd once
        ],
        out_specs=pl.BlockSpec((B, 1, K, J), lambda e: (0, e, 0, 0)),
    )

    return pl.pallas_call(
        _einsum_gather_kernel,
        out_shape=jax.ShapeDtypeStruct((B, E, K, J), jnp.float32),
        grid_spec=grid_spec,
        compiler_params=pltpu.CompilerParams(
            dimension_semantics=("parallel",),        # E >= 2 -> v7x dual-TC sharding
            vmem_limit_bytes=48 * 1024 * 1024),       # < v7x 64 MiB physical VMEM
        cost_estimate=pl.CostEstimate(
            flops=flops, transcendentals=0, bytes_accessed=bytes_accessed),
    )(ind_e, X, W)


if __name__ == "__main__":
    # Small shapes consistent with the module's forward:
    B, T, I = 2, 16, 32      # X: (B, T, I)
    E, J, K = 4, 32, 8       # W: (E, I, J), ind: (B, E, K)

    key = jax.random.PRNGKey(0)
    kx, kw, ki = jax.random.split(key, 3)
    X = jax.random.uniform(kx, (B, T, I), dtype=jnp.float32)
    # Deterministic analogue of nn.Parameter(torch.rand(E, I, J)):
    W = jax.random.uniform(kw, (E, I, J), dtype=jnp.float32)
    ind = jax.random.randint(ki, (B, E, K), 0, T, dtype=jnp.int32)

    # Pure-JAX reference (full einsum then gather), mirrors the PyTorch code.
    Y = jnp.einsum('bti,eij->betj', X, W)
    ref = jnp.take_along_axis(Y, ind[..., None], axis=2)

    # f32 path: exact check.
    out = jax.block_until_ready(einsum_gather(X, W, ind))
    assert out.shape == (B, E, K, J), out.shape
    assert jnp.allclose(out, ref, rtol=1e-5, atol=1e-5)

    # bf16-operand path (MXU-native on v5e/v6e/v7x, f32 accumulation).
    out_bf16 = jax.block_until_ready(
        einsum_gather(X, W, ind, dot_dtype=jnp.bfloat16))
    assert jnp.allclose(out_bf16, ref, rtol=2e-2, atol=2e-2)

    print("KERNEL_OK")
</pallas_src>

<mosaic_0001>
module attributes {stable_mosaic.version = 11 : i64} {
  func.func @_einsum_gather_kernel(%arg0: i32, %arg1: memref<1x2x8xi32, #tpu.memory_space<vmem>>, %arg2: memref<2x16x32xf32, #tpu.memory_space<vmem>>, %arg3: memref<1x32x32xf32, #tpu.memory_space<vmem>>, %arg4: memref<2x1x8x32xf32, #tpu.memory_space<vmem>>) attributes {dimension_semantics = [#tpu.dimension_semantics<parallel>], iteration_bounds = array<i64: 4>, scalar_prefetch = 0 : i64, scratch_operands = 0 : i64, tpu.core_type = #tpu.core_type<tc>, window_params = [{transform_indices = @transform_0, window_bounds = array<i64: 1, 2, 8>}, {pipeline_mode = #tpu.pipeline_mode<synchronous>, transform_indices = @transform_1, window_bounds = array<i64: 2, 16, 32>}, {transform_indices = @transform_2, window_bounds = array<i64: 1, 32, 32>}, {transform_indices = @transform_3, window_bounds = array<i64: 2, 1, 8, 32>}]} {
    %c0 = arith.constant 0 : index
    %c0_0 = arith.constant 0 : index
    %c0_1 = arith.constant 0 : index
    %0 = vector.load %arg1[%c0, %c0_0, %c0_1] : memref<1x2x8xi32, #tpu.memory_space<vmem>>, vector<1x2x8xi32>
    %1 = vector.shape_cast %0 : vector<1x2x8xi32> to vector<2x8xi32>
    %2 = tpu.iota {dimensions = array<i32: 2>} : vector<2x8x16xi32>
    %3 = vector.shape_cast %1 : vector<2x8xi32> to vector<2x8x1xi32>
    %4 = vector.broadcast %3 : vector<2x8x1xi32> to vector<2x8x16xi32>
    %5 = arith.cmpi eq, %2, %4 : vector<2x8x16xi32>
    %6 = arith.extui %5 : vector<2x8x16xi1> to vector<2x8x16xi32>
    %7 = arith.sitofp %6 : vector<2x8x16xi32> to vector<2x8x16xf32>
    %c0_2 = arith.constant 0 : index
    %c0_3 = arith.constant 0 : index
    %c0_4 = arith.constant 0 : index
    %8 = vector.load %arg2[%c0_2, %c0_3, %c0_4] : memref<2x16x32xf32, #tpu.memory_space<vmem>>, vector<2x16x32xf32>
    "tpu.trace_start"() <{level = 10 : i32, message = "bkt,bti->bki"}> : () -> ()
    %cst = arith.constant dense<0.000000e+00> : vector<2x8x32xf32>
    %9 = tpu.matmul %7, %8, %cst {dimension_numbers = #tpu.dot_dimension_numbers<[2], [1], [1], [2], [0, 0, 0, 1, 1, 2], [0], [0]>} : vector<2x8x16xf32>, vector<2x16x32xf32>, vector<2x8x32xf32> -> vector<2x8x32xf32>
    "tpu.trace_stop"() : () -> ()
    %10 = vector.shape_cast %9 : vector<2x8x32xf32> to vector<16x32xf32>
    %c0_5 = arith.constant 0 : index
    %c0_6 = arith.constant 0 : index
    %c0_7 = arith.constant 0 : index
    %11 = vector.load %arg3[%c0_5, %c0_6, %c0_7] : memref<1x32x32xf32, #tpu.memory_space<vmem>>, vector<1x32x32xf32>
    %12 = vector.shape_cast %11 : vector<1x32x32xf32> to vector<32x32xf32>
    %cst_8 = arith.constant dense<0.000000e+00> : vector<16x32xf32>
    %13 = tpu.matmul %10, %12, %cst_8 {dimension_numbers = #tpu.dot_dimension_numbers<[1], [0], [0], [1], [0, 0, 1, 1], [], []>} : vector<16x32xf32>, vector<32x32xf32>, vector<16x32xf32> -> vector<16x32xf32>
    %14 = vector.shape_cast %13 : vector<16x32xf32> to vector<2x1x8x32xf32>
    %c0_9 = arith.constant 0 : index
    %c0_10 = arith.constant 0 : index
    %c0_11 = arith.constant 0 : index
    %c0_12 = arith.constant 0 : index
    %15 = vector.load %arg4[%c0_9, %c0_10, %c0_11, %c0_12] : memref<2x1x8x32xf32, #tpu.memory_space<vmem>>, vector<2x1x8x32xf32>
    tpu.vector_store %arg4[%c0_9, %c0_10, %c0_11, %c0_12], %14 {strides = array<i32>} : memref<2x1x8x32xf32, #tpu.memory_space<vmem>>, vector<2x1x8x32xf32>,
    return
  }
  func.func @transform_0(%arg0: i32) -> (i32, i32, i32) {
    %c0_i32 = arith.constant 0 : i32
    %c0_i32_0 = arith.constant 0 : i32
    %c0_i32_1 = arith.constant 0 : i32
    return %arg0, %c0_i32, %c0_i32_0 : i32, i32, i32
  }
  func.func @transform_1(%arg0: i32) -> (i32, i32, i32) {
    %c0_i32 = arith.constant 0 : i32
    %c0_i32_0 = arith.constant 0 : i32
    %c0_i32_1 = arith.constant 0 : i32
    %c0_i32_2 = arith.constant 0 : i32
    return %c0_i32, %c0_i32_0, %c0_i32_1 : i32, i32, i32
  }
  func.func @transform_2(%arg0: i32) -> (i32, i32, i32) {
    %c0_i32 = arith.constant 0 : i32
    %c0_i32_0 = arith.constant 0 : i32
    %c0_i32_1 = arith.constant 0 : i32
    return %arg0, %c0_i32, %c0_i32_0 : i32, i32, i32
  }
  func.func @transform_3(%arg0: i32) -> (i32, i32, i32, i32) {
    %c0_i32 = arith.constant 0 : i32
    %c0_i32_0 = arith.constant 0 : i32
    %c0_i32_1 = arith.constant 0 : i32
    %c0_i32_2 = arith.constant 0 : i32
    return %c0_i32, %arg0, %c0_i32_0, %c0_i32_1 : i32, i32, i32, i32
  }
}

</mosaic_0001>

<llo_original>
// kernel: tpu_custom_call.1
$region0: #{tpu_custom_call.1}
  #allocation0 [shape = 'u32[]', space=smem, size = 0x4, offset = 0x4, fixed_abs, tag = 'smem constant byte address 0x4 - core index']
  #allocation1 [shape = 'u32[144,128]{1,0:T(1,128)}', space=vmem, size = 0x12000, scoped, tag = 'internal scratch']
  %s0 = inlined_call_operand.hbm [shape: s32[4,2,8], index: 0, kind: input, shape index: {}]
  %s1 = inlined_call_operand.hbm [shape: f32[2,16,32], index: 1, kind: input, shape index: {}]
  %s2 = inlined_call_operand.hbm [shape: f32[4,32,32], index: 2, kind: input, shape index: {}]
  %s3 = inlined_call_operand.hbm [shape: f32[2,4,8,32], index: 3, kind: output, shape index: {}]
  %s4 = sld [smem:[#allocation0]]
  $region57: #{tpu_custom_call.1} parent=0
    _
  %s6 = ssub.s32 1, %s4
  %s7 = scalar_select 0, %s6, %s4
  $region1: #{tpu_custom_call.1} parent=0
    #allocation2 [shape = 'u8[2048]{0}', space=vmem, size = 0x800, scoped, tag = 'input window, operand 0']
    #allocation3 [shape = 's32[2]{0}', space=sflag, size = 0x8, scoped, tag = 'scoped memory for tpu_custom_call.1']
    #allocation4 [shape = 's32[2]{0}', space=sflag, size = 0x8, scoped, tag = 'scoped memory for tpu_custom_call.1']
    #allocation5 [shape = 'u8[16384]{0}', space=vmem, size = 0x4000, scoped, tag = 'input window, operand 1, single buffered']
    #allocation6 [shape = 's32[1]{0}', space=sflag, size = 0x4, scoped, tag = 'scoped memory for tpu_custom_call.1']
    #allocation7 [shape = 'u8[32768]{0}', space=vmem, size = 0x8000, scoped, tag = 'input window, operand 2']
    #allocation8 [shape = 'u8[16384]{0}', space=vmem, size = 0x4000, scoped, tag = 'output window, operand 0']
    %8 = vsyncpa [#allocation3], 0
    %s9 = scalar_lea.sflag [#allocation3], 1
    %10 = vsyncpa %s9, 0
    %11 = vsyncpa [#allocation6], 0
    %12 = vsyncpa [#allocation4], 0
    %s13 = scalar_lea.sflag [#allocation4], 1
    %14 = vsyncpa %s13, 0
    loop: start=0, step=1, limit=6
    $region2: #{tpu_custom_call.1} parent=1 // loop_pre_header
      _
    $region3: #{tpu_custom_call.1} parent=1 // loop_header
      %s16 = sphi 0, %s20
      %p17 = scmp.ge.s32.totalorder %s16, 6
      %s26 = sphi 0, %s28
      %s29 = sphi 0, %s26
      %s30 = sphi 0, %s29
      %s46 = sphi 0, %s30
      %s50 = sphi 0, %s50
      %s52 = sphi 0, %s50
      %s53 = sphi 0, %s52
      %s67 = sphi 0, %s53
      %s73 = sphi 0, %s75
      %s76 = sphi 0, %s73
      %s77 = sphi 0, %s76
      %s93 = sphi 0, %s77
      %s99 = sphi 0, %s101
      %s102 = sphi 0, %s99
      %s103 = sphi 0, %s102
      %s119 = sphi 0, %s103
    $region4: #{tpu_custom_call.1} parent=1 // loop_header_branch
      %19 = sbr.rel (%p17) target = $region8
    $region5: #{tpu_custom_call.1} parent=1 // loop_body
      %s21 = ssub.s32 %s16, 1
      %s22 = ssub.s32 %s16, 2
      %s23 = sadd.s32 %s16, 1
      %s24 = ssub.s32 %s16, %s23
      %p25 = scmp.eq.s32.totalorder %s24, 0
      %s27 = sadd.s32 %s26, 1
      %s28 = scalar_select %p25, %s26, %s27
      %p31 = pneg %p25
      %p32 = scmp.eq.s32.totalorder %s16, 3
      %p33 = por %p31, %p32
      %p34 = scmp.ne.s32.totalorder %s26, %s29
      %p35 = scmp.eq.s32.totalorder %s16, 0
      %p36 = por %p34, %p35
      %p37 = scmp.ne.s32.totalorder %s26, %s29
      %p38 = scmp.eq.s32.totalorder %s21, 3
      %p39 = por %p37, %p38
      %p40 = scmp.ne.s32.totalorder %s29, %s30
      %p41 = scmp.eq.s32.totalorder %s21, 0
      %p42 = por %p40, %p41
      %p43 = scmp.ne.s32.totalorder %s29, %s30
      %p44 = scmp.eq.s32.totalorder %s22, 3
      %p45 = por %p43, %p44
      %p47 = scmp.ne.s32.totalorder %s30, %s46
      %p48 = scmp.eq.s32.totalorder %s22, 0
      %p49 = por %p47, %p48
      %s51 = sadd.s32 %s50, 1
      %p54 = scmp.eq.s32.totalorder %s16, 3
      %p55 = scmp.ne.s32.totalorder %s50, %s52
      %p56 = scmp.eq.s32.totalorder %s16, 0
      %p57 = por %p55, %p56
      %p58 = scmp.ne.s32.totalorder %s50, %s52
      %p59 = scmp.eq.s32.totalorder %s21, 3
      %p60 = por %p58, %p59
      %p61 = scmp.ne.s32.totalorder %s52, %s53
      %p62 = scmp.eq.s32.totalorder %s21, 0
      %p63 = por %p61, %p62
      %p64 = scmp.ne.s32.totalorder %s52, %s53
      %p65 = scmp.eq.s32.totalorder %s22, 3
      %p66 = por %p64, %p65
      %p68 = scmp.ne.s32.totalorder %s53, %s67
      %p69 = scmp.eq.s32.totalorder %s22, 0
      %p70 = por %p68, %p69
      %s71 = ssub.s32 %s16, %s23
      %p72 = scmp.eq.s32.totalorder %s71, 0
      %s74 = sadd.s32 %s73, 1
      %s75 = scalar_select %p72, %s73, %s74
      %p78 = pneg %p72
      %p79 = scmp.eq.s32.totalorder %s16, 3
      %p80 = por %p78, %p79
      %p81 = scmp.ne.s32.totalorder %s73, %s76
      %p82 = scmp.eq.s32.totalorder %s16, 0
      %p83 = por %p81, %p82
      %p84 = scmp.ne.s32.totalorder %s73, %s76
      %p85 = scmp.eq.s32.totalorder %s21, 3
      %p86 = por %p84, %p85
      %p87 = scmp.ne.s32.totalorder %s76, %s77
      %p88 = scmp.eq.s32.totalorder %s21, 0
      %p89 = por %p87, %p88
      %p90 = scmp.ne.s32.totalorder %s76, %s77
      %p91 = scmp.eq.s32.totalorder %s22, 3
      %p92 = por %p90, %p91
      %p94 = scmp.ne.s32.totalorder %s77, %s93
      %p95 = scmp.eq.s32.totalorder %s22, 0
      %p96 = por %p94, %p95
      %s97 = ssub.s32 %s16, %s23
      %p98 = scmp.eq.s32.totalorder %s97, 0
      %s100 = sadd.s32 %s99, 1
      %s101 = scalar_select %p98, %s99, %s100
      %p104 = pneg %p98
      %p105 = scmp.eq.s32.totalorder %s16, 3
      %p106 = por %p104, %p105
      %p107 = scmp.ne.s32.totalorder %s99, %s102
      %p108 = scmp.eq.s32.totalorder %s16, 0
      %p109 = por %p107, %p108
      %p110 = scmp.ne.s32.totalorder %s99, %s102
      %p111 = scmp.eq.s32.totalorder %s21, 3
      %p112 = por %p110, %p111
      %p113 = scmp.ne.s32.totalorder %s102, %s103
      %p114 = scmp.eq.s32.totalorder %s21, 0
      %p115 = por %p113, %p114
      %p116 = scmp.ne.s32.totalorder %s102, %s103
      %p117 = scmp.eq.s32.totalorder %s22, 3
      %p118 = por %p116, %p117
      %p120 = scmp.ne.s32.totalorder %s103, %s119
      %p121 = scmp.eq.s32.totalorder %s22, 0
      %p122 = por %p120, %p121
      %p123 = scmp.le.s32.totalorder 1, %s16
      %p124 = scmp.lt.s32.totalorder %s16, 5
      %p125 = pnand %p123, %p124
      %p126 = pneg %p125
      // Predicated region
      $region9: #{tpu_custom_call.1} parent=5 // pred_check
        _
      $region10: #{tpu_custom_call.1} parent=5 // pred_check_branch
        %128 = sbr.rel (%p125) target = $region12
      $region11: #{tpu_custom_call.1} parent=5 // pred_region
        %s129 = ssub.s32 %s16, 1
        // Predicated region
        $region13: #{tpu_custom_call.1} parent=11 // pred_check
          %p130 = pneg %p63
        $region14: #{tpu_custom_call.1} parent=11 // pred_check_branch
          %132 = sbr.rel (%p130) target = $region16
        $region15: #{tpu_custom_call.1} parent=11 // pred_region
          %s134 = ssub.s32 512, 512
          %135 = vsyncadd [#allocation6], %s134
          %s136 = sshll.u32 [#allocation5], 4
          %s137 = int_to_ptr.vmem [resolvable:$true] %s136
          %142 = dma.hbm_to_vmem [thread:$0]  %s1, 512, %s137, [#allocation6], 128, 128, 8
        $region16: #{tpu_custom_call.1} parent=11 // pred_fallthru
          _
      $region12: #{tpu_custom_call.1} parent=5 // pred_fallthru
        _
      %p143 = scmp.lt.s32.totalorder %s16, 4
      // Predicated region
      $region17: #{tpu_custom_call.1} parent=5 // pred_check
        %p144 = pneg %p143
      $region18: #{tpu_custom_call.1} parent=5 // pred_check_branch
        %146 = sbr.rel (%p144) target = $region20
      $region19: #{tpu_custom_call.1} parent=5 // pred_region
        // Predicated region
        $region21: #{tpu_custom_call.1} parent=19 // pred_check
          %p147 = pneg %p36
        $region22: #{tpu_custom_call.1} parent=19 // pred_check_branch
          %149 = sbr.rel (%p147) target = $region24
        $region23: #{tpu_custom_call.1} parent=19 // pred_region
          %s150 = sand.u32 %s16, 1
          %s151 = scalar_lea.sflag [#allocation3], %s150
          %s152 = sand.u32 %s26, 1
          %s153 = smul.addr %s152, 2
          %s154 = scalar_lea.vmem [#allocation2], %s153
          %s156 = ssub.s32 32, 32
          %157 = vsyncadd %s151, %s156
          %s158 = smul.addr %s16, 32
          %s159 = scalar_lea.hbm %s0, %s158
          %s161 = sshll.u32 %s154, 4
          %s162 = int_to_ptr.vmem [resolvable:$true] %s161
          %164 = dma.hbm_to_vmem [thread:$0]  %s159, 32, %s162, %s151
        $region24: #{tpu_custom_call.1} parent=19 // pred_fallthru
          _
        // Predicated region
        $region25: #{tpu_custom_call.1} parent=19 // pred_check
          %p165 = pneg %p83
        $region26: #{tpu_custom_call.1} parent=19 // pred_check_branch
          %167 = sbr.rel (%p165) target = $region28
        $region27: #{tpu_custom_call.1} parent=19 // pred_region
          %s168 = sand.u32 %s16, 1
          %s169 = scalar_lea.sflag [#allocation3], %s168
          %s170 = sand.u32 %s73, 1
          %s171 = smul.addr %s170, 32
          %s172 = scalar_lea.vmem [#allocation7], %s171
          %s174 = ssub.s32 512, 512
          %175 = vsyncadd %s169, %s174
          %s176 = smul.addr %s16, 4
          %s177 = smul.addr %s176, 128
          %s178 = scalar_lea.hbm %s2, %s177
          %s179 = sshll.u32 %s172, 4
          %s180 = int_to_ptr.vmem [resolvable:$true] %s179
          %185 = dma.hbm_to_vmem [thread:$0]  %s178, 512, %s180, %s169, 128, 128, 8
        $region28: #{tpu_custom_call.1} parent=19 // pred_fallthru
          _
      $region20: #{tpu_custom_call.1} parent=5 // pred_fallthru
        _
      %p186 = scmp.le.s32.totalorder 1, %s16
      %p187 = scmp.lt.s32.totalorder %s16, 5
      %p188 = pnand %p186, %p187
      %p189 = pneg %p188
      // Predicated region
      $region29: #{tpu_custom_call.1} parent=5 // pred_check
        _
      $region30: #{tpu_custom_call.1} parent=5 // pred_check_branch
        %191 = sbr.rel (%p188) target = $region32
      $region31: #{tpu_custom_call.1} parent=5 // pred_region
        %s192 = ssub.s32 %s16, 1
        %s193 = sand.u32 %s21, 1
        %s194 = scalar_lea.sflag [#allocation3], %s193
        %s195 = sand.u32 %s29, 1
        %s196 = smul.addr %s195, 2
        %s197 = scalar_lea.vmem [#allocation2], %s196
        // Predicated region
        $region33: #{tpu_custom_call.1} parent=31 // pred_check
          %p198 = pneg %p42
        $region34: #{tpu_custom_call.1} parent=31 // pred_check_branch
          %200 = sbr.rel (%p198) target = $region36
        $region35: #{tpu_custom_call.1} parent=31 // pred_region
          %201 = dma.done %s194, 32
        $region36: #{tpu_custom_call.1} parent=31 // pred_fallthru
          _
        // Predicated region
        $region37: #{tpu_custom_call.1} parent=31 // pred_check
          %p202 = pneg %p63
        $region38: #{tpu_custom_call.1} parent=31 // pred_check_branch
          %204 = sbr.rel (%p202) target = $region40
        $region39: #{tpu_custom_call.1} parent=31 // pred_region
          %205 = dma.done [#allocation6], 512
        $region40: #{tpu_custom_call.1} parent=31 // pred_fallthru
          _
        %s206 = sand.u32 %s21, 1
        %s207 = scalar_lea.sflag [#allocation3], %s206
        %s208 = sand.u32 %s76, 1
        %s209 = smul.addr %s208, 32
        %s210 = scalar_lea.vmem [#allocation7], %s209
        // Predicated region
        $region41: #{tpu_custom_call.1} parent=31 // pred_check
          %p211 = pneg %p89
        $region42: #{tpu_custom_call.1} parent=31 // pred_check_branch
          %213 = sbr.rel (%p211) target = $region44
        $region43: #{tpu_custom_call.1} parent=31 // pred_region
          %214 = dma.done %s207, 512
        $region44: #{tpu_custom_call.1} parent=31 // pred_fallthru
          _
        %s215 = sand.u32 %s21, 1
        %s216 = scalar_lea.sflag [#allocation3], %s215
        %s217 = sand.u32 %s29, 1
        %s218 = smul.addr %s217, 2
        %s219 = scalar_lea.vmem [#allocation2], %s218
        %p220 = pneg %p42
        %p221 = pneg %p39
        %p222 = pneg %p63
        %p223 = pneg %p60
        %s224 = sand.u32 %s21, 1
        %s225 = scalar_lea.sflag [#allocation3], %s224
        %s226 = sand.u32 %s76, 1
        %s227 = smul.addr %s226, 32
        %s228 = scalar_lea.vmem [#allocation7], %s227
        %p229 = pneg %p89
        %p230 = pneg %p86
        %p231 = pneg %p115
        %p232 = pneg %p112
        %s233 = sand.u32 %s102, 1
        %s234 = scalar_lea.sflag [#allocation4], %s233
        %s235 = sand.u32 %s102, 1
        %s236 = smul.addr %s235, 16
        %s237 = scalar_lea.vmem [#allocation8], %s236
        %v238 = vld [vmem:[%s197] sm:$0x3]
        %v239 = vlaneseq
        %v240 = vand.u32 %v239, 127
        %v241 = vlaneseq
        %v242 = vshrl.u32 %v241, 7
        %v243 = vsub.s32 0, %v242
        %v244 = vrot.slane %v238, %v243
        %246 = vbcast.lane.b32.xlu0 %v244, 256
        %v247 = vpop.permute.xlu0 %246
        %v248 = vlaneseq
        %v249 = vshrl.u32 %v248, 7
        %v250 = vsub.s32 1, %v249
        %v251 = vrot.slane %v238, %v250
        %253 = vbcast.lane.b32.xlu0 %v251, 256
        %v254 = vpop.permute.xlu0 %253
        %vm255 = vcmp.eq.s32.totalorder %v240, %v247
        %vm256 = vcmp.eq.s32.totalorder %v240, %v254
        %v257 = vsel %vm255, 1, 0
        %v258 = vsel %vm256, 1, 0
        %v259 = vcvt.s32.f32 %v257
        %v260 = vcvt.s32.f32 %v258
        %v261 = vld [vmem:[#allocation5] sm:$0xff]
        %v262 = vld [vmem:[#allocation5 + $0x8] sm:$0xff]
        %v263 = vld [vmem:[#allocation5 + $0x10] sm:$0xff]
        %v264 = vld [vmem:[#allocation5 + $0x18] sm:$0xff]
        %vm265 = vcmask 130048
        %v267 = vsel %vm265, %v259, 0
        %269 = vmatprep.subr.mxu0 0.0
        %270 = vmatpush1.msra.mxu0 %v261
        %271 = vmatprep.subr.mxu0 0.0
        %272 = vmatpush1.msra.mxu0 %v262
        %273 = vmatprep.subr.mxu0 0.0
        %274 = vmatpush1.msra.mxu0 0.0
        %275 = vmatprep.subr.mxu0 0.0
        %276 = vmatpush1.msra.mxu0 0.0
        %277 = vmatprep.subr.mxu0 0.0
        %278 = vmatpush1.msra.mxu0 0.0
        %279 = vmatprep.subr.mxu0 0.0
        %280 = vmatpush1.msra.mxu0 0.0
        %281 = vmatprep.subr.mxu0 0.0
        %282 = vmatpush1.msra.mxu0 0.0
        %283 = vmatprep.subr.mxu0 0.0
        %284 = vmatpush1.msra.mxu0 0.0
        %285 = vmatprep.subr.mxu0 0.0
        %286 = vmatpush1.msra.mxu0 0.0
        %287 = vmatprep.subr.mxu0 0.0
        %288 = vmatpush1.msra.mxu0 0.0
        %289 = vmatprep.subr.mxu0 0.0
        %290 = vmatpush1.msra.mxu0 0.0
        %291 = vmatprep.subr.mxu0 0.0
        %292 = vmatpush1.msra.mxu0 0.0
        %293 = vmatprep.subr.mxu0 0.0
        %294 = vmatpush1.msra.mxu0 0.0
        %295 = vmatprep.subr.mxu0 0.0
        %296 = vmatpush1.msra.mxu0 0.0
        %297 = vmatprep.subr.mxu0 0.0
        %298 = vmatpush1.msra.mxu0 0.0
        %299 = vmatprep.subr.mxu0 0.0
        %300 = vmatpush1.msra.mxu0 0.0
        %301 = vmatprep.subr.mxu0 0.0
        %302 = vmatpush1.msra.mxu0 0.0
        %303 = vmatprep.subr.mxu0 0.0
        %304 = vmatpush1.msra.mxu0 0.0
        %305 = vmatprep.subr.mxu0 0.0
        %306 = vmatpush1.msra.mxu0 0.0
        %307 = vmatprep.subr.mxu0 0.0
        %308 = vmatpush1.msra.mxu0 0.0
        %309 = vmatprep.subr.mxu0 0.0
        %310 = vmatpush1.msra.mxu0 0.0
        %311 = vmatprep.subr.mxu0 0.0
        %312 = vmatpush1.msra.mxu0 0.0
        %313 = vmatprep.subr.mxu0 0.0
        %314 = vmatpush1.msra.mxu0 0.0
        %315 = vmatprep.subr.mxu0 0.0
        %316 = vmatpush1.msra.mxu0 0.0
        %317 = vmatprep.subr.mxu0 0.0
        %318 = vmatpush1.msra.mxu0 0.0
        %319 = vmatprep.subr.mxu0 0.0
        %320 = vmatpush1.msra.mxu0 0.0
        %321 = vmatprep.subr.mxu0 0.0
        %322 = vmatpush1.msra.mxu0 0.0
        %323 = vmatprep.subr.mxu0 0.0
        %324 = vmatpush1.msra.mxu0 0.0
        %325 = vmatprep.subr.mxu0 0.0
        %326 = vmatpush1.msra.mxu0 0.0
        %327 = vmatprep.subr.mxu0 0.0
        %328 = vmatpush1.msra.mxu0 0.0
        %329 = vmatprep.subr.mxu0 0.0
        %330 = vmatpush1.msra.mxu0 0.0
        %331 = vmatprep.subr.mxu0 0.0
        %332 = vmatpush1.msra.mxu0 0.0
        %333 = vmatprep.mubr.f32.mxu0 0.0
        %334 = vmatmul.mubr.f32.gmra.mrb[0].mxu0 %v267
        %v335 = vpop.f32.mrb[0].mxu0
        %v336 = vadd.f32 0.0, %v335
        %v337 = vpop.f32.mrb[0].mxu0
        %338 = vdwg.mxu0
        %v340 = vsel %vm265, %v260, 0
        %342 = vmatprep.subr.mxu0 0.0
        %343 = vmatpush1.msra.mxu0 %v263
        %344 = vmatprep.subr.mxu0 0.0
        %345 = vmatpush1.msra.mxu0 %v264
        %346 = vmatprep.subr.mxu0 0.0
        %347 = vmatpush1.msra.mxu0 0.0
        %348 = vmatprep.subr.mxu0 0.0
        %349 = vmatpush1.msra.mxu0 0.0
        %350 = vmatprep.subr.mxu0 0.0
        %351 = vmatpush1.msra.mxu0 0.0
        %352 = vmatprep.subr.mxu0 0.0
        %353 = vmatpush1.msra.mxu0 0.0
        %354 = vmatprep.subr.mxu0 0.0
        %355 = vmatpush1.msra.mxu0 0.0
        %356 = vmatprep.subr.mxu0 0.0
        %357 = vmatpush1.msra.mxu0 0.0
        %358 = vmatprep.subr.mxu0 0.0
        %359 = vmatpush1.msra.mxu0 0.0
        %360 = vmatprep.subr.mxu0 0.0
        %361 = vmatpush1.msra.mxu0 0.0
        %362 = vmatprep.subr.mxu0 0.0
        %363 = vmatpush1.msra.mxu0 0.0
        %364 = vmatprep.subr.mxu0 0.0
        %365 = vmatpush1.msra.mxu0 0.0
        %366 = vmatprep.subr.mxu0 0.0
        %367 = vmatpush1.msra.mxu0 0.0
        %368 = vmatprep.subr.mxu0 0.0
        %369 = vmatpush1.msra.mxu0 0.0
        %370 = vmatprep.subr.mxu0 0.0
        %371 = vmatpush1.msra.mxu0 0.0
        %372 = vmatprep.subr.mxu0 0.0
        %373 = vmatpush1.msra.mxu0 0.0
        %374 = vmatprep.subr.mxu0 0.0
        %375 = vmatpush1.msra.mxu0 0.0
        %376 = vmatprep.subr.mxu0 0.0
        %377 = vmatpush1.msra.mxu0 0.0
        %378 = vmatprep.subr.mxu0 0.0
        %379 = vmatpush1.msra.mxu0 0.0
        %380 = vmatprep.subr.mxu0 0.0
        %381 = vmatpush1.msra.mxu0 0.0
        %382 = vmatprep.subr.mxu0 0.0
        %383 = vmatpush1.msra.mxu0 0.0
        %384 = vmatprep.subr.mxu0 0.0
        %385 = vmatpush1.msra.mxu0 0.0
        %386 = vmatprep.subr.mxu0 0.0
        %387 = vmatpush1.msra.mxu0 0.0
        %388 = vmatprep.subr.mxu0 0.0
        %389 = vmatpush1.msra.mxu0 0.0
        %390 = vmatprep.subr.mxu0 0.0
        %391 = vmatpush1.msra.mxu0 0.0
        %392 = vmatprep.subr.mxu0 0.0
        %393 = vmatpush1.msra.mxu0 0.0
        %394 = vmatprep.subr.mxu0 0.0
        %395 = vmatpush1.msra.mxu0 0.0
        %396 = vmatprep.subr.mxu0 0.0
        %397 = vmatpush1.msra.mxu0 0.0
        %398 = vmatprep.subr.mxu0 0.0
        %399 = vmatpush1.msra.mxu0 0.0
        %400 = vmatprep.subr.mxu0 0.0
        %401 = vmatpush1.msra.mxu0 0.0
        %402 = vmatprep.subr.mxu0 0.0
        %403 = vmatpush1.msra.mxu0 0.0
        %404 = vmatprep.subr.mxu0 0.0
        %405 = vmatpush1.msra.mxu0 0.0
        %406 = vmatprep.mubr.f32.mxu0 0.0
        %407 = vmatmul.mubr.f32.gmra.mrb[0].mxu0 %v340
        %v408 = vpop.f32.mrb[0].mxu0
        %v409 = vadd.f32 0.0, %v408
        %v410 = vpop.f32.mrb[0].mxu0
        %411 = vdwg.mxu0
        %v412 = vld [vmem:[%s210] sm:$0xff]
        %v413 = vld [vmem:[%s210 + $0x8] sm:$0xff]
        %v414 = vld [vmem:[%s210 + $0x10] sm:$0xff]
        %v415 = vld [vmem:[%s210 + $0x18] sm:$0xff]
        %vm416 = vcmask 261120
        %v418 = vsel %vm416, %v336, 0
        %v421 = vsel %vm416, %v409, 0
        %423 = vmatprep.subr.mxu0 0.0
        %424 = vmatpush1.msra.mxu0 %v412
        %425 = vmatprep.subr.mxu0 0.0
        %426 = vmatpush1.msra.mxu0 %v413
        %427 = vmatprep.subr.mxu0 0.0
        %428 = vmatpush1.msra.mxu0 %v414
        %429 = vmatprep.subr.mxu0 0.0
        %430 = vmatpush1.msra.mxu0 %v415
        %431 = vmatprep.subr.mxu0 0.0
        %432 = vmatpush1.msra.mxu0 0.0
        %433 = vmatprep.subr.mxu0 0.0
        %434 = vmatpush1.msra.mxu0 0.0
        %435 = vmatprep.subr.mxu0 0.0
        %436 = vmatpush1.msra.mxu0 0.0
        %437 = vmatprep.subr.mxu0 0.0
        %438 = vmatpush1.msra.mxu0 0.0
        %439 = vmatprep.subr.mxu0 0.0
        %440 = vmatpush1.msra.mxu0 0.0
        %441 = vmatprep.subr.mxu0 0.0
        %442 = vmatpush1.msra.mxu0 0.0
        %443 = vmatprep.subr.mxu0 0.0
        %444 = vmatpush1.msra.mxu0 0.0
        %445 = vmatprep.subr.mxu0 0.0
        %446 = vmatpush1.msra.mxu0 0.0
        %447 = vmatprep.subr.mxu0 0.0
        %448 = vmatpush1.msra.mxu0 0.0
        %449 = vmatprep.subr.mxu0 0.0
        %450 = vmatpush1.msra.mxu0 0.0
        %451 = vmatprep.subr.mxu0 0.0
        %452 = vmatpush1.msra.mxu0 0.0
        %453 = vmatprep.subr.mxu0 0.0
        %454 = vmatpush1.msra.mxu0 0.0
        %455 = vmatprep.subr.mxu0 0.0
        %456 = vmatpush1.msra.mxu0 0.0
        %457 = vmatprep.subr.mxu0 0.0
        %458 = vmatpush1.msra.mxu0 0.0
        %459 = vmatprep.subr.mxu0 0.0
        %460 = vmatpush1.msra.mxu0 0.0
        %461 = vmatprep.subr.mxu0 0.0
        %462 = vmatpush1.msra.mxu0 0.0
        %463 = vmatprep.subr.mxu0 0.0
        %464 = vmatpush1.msra.mxu0 0.0
        %465 = vmatprep.subr.mxu0 0.0
        %466 = vmatpush1.msra.mxu0 0.0
        %467 = vmatprep.subr.mxu0 0.0
        %468 = vmatpush1.msra.mxu0 0.0
        %469 = vmatprep.subr.mxu0 0.0
        %470 = vmatpush1.msra.mxu0 0.0
        %471 = vmatprep.subr.mxu0 0.0
        %472 = vmatpush1.msra.mxu0 0.0
        %473 = vmatprep.subr.mxu0 0.0
        %474 = vmatpush1.msra.mxu0 0.0
        %475 = vmatprep.subr.mxu0 0.0
        %476 = vmatpush1.msra.mxu0 0.0
        %477 = vmatprep.subr.mxu0 0.0
        %478 = vmatpush1.msra.mxu0 0.0
        %479 = vmatprep.subr.mxu0 0.0
        %480 = vmatpush1.msra.mxu0 0.0
        %481 = vmatprep.subr.mxu0 0.0
        %482 = vmatpush1.msra.mxu0 0.0
        %483 = vmatprep.subr.mxu0 0.0
        %484 = vmatpush1.msra.mxu0 0.0
        %485 = vmatprep.subr.mxu0 0.0
        %486 = vmatpush1.msra.mxu0 0.0
        %487 = vmatprep.mubr.f32.mxu0 0.0
        %488 = vmatmul.mubr.f32.gmra.mrb[0].mxu0 %v418
        %v489 = vpop.f32.mrb[0].mxu0
        %v490 = vadd.f32 0.0, %v489
        %v491 = vpop.f32.mrb[0].mxu0
        %492 = vmatprep.mubr.f32.mxu0 0.0
        %493 = vmatmul.mubr.f32.gmra.mrb[0].mxu0 %v421
        %v494 = vpop.f32.mrb[0].mxu0
        %v495 = vadd.f32 0.0, %v494
        %v496 = vpop.f32.mrb[0].mxu0
        %497 = vdwg.mxu0
        %498 = vst.msk [vmem:[%s237] sm:$0xff] %vm416, %v490
        %499 = vst.msk [vmem:[%s237 + $0x8] sm:$0xff] %vm416, %v495
        %s500 = sand.u32 %s102, 1
        %s501 = scalar_lea.sflag [#allocation4], %s500
        %s502 = sand.u32 %s102, 1
        %s503 = smul.addr %s502, 16
        %s504 = scalar_lea.vmem [#allocation8], %s503
        // Predicated region
        $region45: #{tpu_custom_call.1} parent=31 // pred_check
          %p505 = pneg %p112
        $region46: #{tpu_custom_call.1} parent=31 // pred_check_branch
          %507 = sbr.rel (%p505) target = $region48
        $region47: #{tpu_custom_call.1} parent=31 // pred_region
          %s509 = ssub.s32 256, 256
          %510 = vsyncadd %s501, %s509
          %s511 = smul.addr %s21, 128
          %s512 = scalar_lea.hbm %s3, %s511
          %s513 = sshll.u32 %s504, 4
          %s514 = int_to_ptr.vmem [resolvable:$true] %s513
          %519 = dma.vmem_to_hbm [thread:$0]  %s514, 256, %s512, %s501, 128, 512, 8
        $region48: #{tpu_custom_call.1} parent=31 // pred_fallthru
          _
      $region32: #{tpu_custom_call.1} parent=5 // pred_fallthru
        _
      %p520 = scmp.le.s32.totalorder 2, %s16
      // Predicated region
      $region49: #{tpu_custom_call.1} parent=5 // pred_check
        %p521 = pneg %p520
      $region50: #{tpu_custom_call.1} parent=5 // pred_check_branch
        %523 = sbr.rel (%p521) target = $region52
      $region51: #{tpu_custom_call.1} parent=5 // pred_region
        %s524 = ssub.s32 %s16, 2
        // Predicated region
        $region53: #{tpu_custom_call.1} parent=51 // pred_check
          %p525 = pneg %p118
        $region54: #{tpu_custom_call.1} parent=51 // pred_check_branch
          %527 = sbr.rel (%p525) target = $region56
        $region55: #{tpu_custom_call.1} parent=51 // pred_region
          %s528 = sand.u32 %s103, 1
          %s529 = scalar_lea.sflag [#allocation4], %s528
          %s530 = sand.u32 %s103, 1
          %s531 = smul.addr %s530, 16
          %s532 = scalar_lea.vmem [#allocation8], %s531
          %533 = dma.done %s529, 256
        $region56: #{tpu_custom_call.1} parent=51 // pred_fallthru
          _
      $region52: #{tpu_custom_call.1} parent=5 // pred_fallthru
        _
    $region6: #{tpu_custom_call.1} parent=1 // loop_footer
      %s20 = sadd.s32 1, %s16
    $region7: #{tpu_custom_call.1} parent=1 // loop_footer_branch
      %15 = sbr.rel target = $region3
    $region8: #{tpu_custom_call.1} parent=1 // loop_exit
      _
    %534 = vsyncpa [#allocation3], 1
    %s535 = scalar_lea.sflag [#allocation3], 1
    %536 = vsyncpa %s535, 1
    %537 = vsyncpa [#allocation6], 1
    %538 = vsyncpa [#allocation4], 1
    %s539 = scalar_lea.sflag [#allocation4], 1
    %540 = vsyncpa %s539, 1

</llo_original>
